<compile_context>
chip_gen: v7x
topology: tpu7x:2x2x1
jax: 0.10.0
libtpu: 0.0.40
codegen_flags: <defaults>
</compile_context>

<pallas_src>
import functools

import jax
import jax.numpy as jnp
from jax.experimental import pallas as pl
from jax.experimental.pallas import tpu as pltpu


def _round_up(x, m):
    return (x + m - 1) // m * m


def feature_extractor_kernel(xs_ref, xp_ref, p_ref, out_ref, *,
                             w1s_rows, w1p_off, w1p_rows,
                             w2_off, w2_rows, b1_off, b2_off):
    """Two-layer MLP on one batch tile (batch folded by `fold` into lanes).

    xs_ref : (tbf, fold*state_dim)  folded state rows
    xp_ref : (tbf, fold*n_obj)      folded preference rows
    p_ref  : (rows, fold*hidden)    packed block-diagonal parameter slab
    out_ref: (tbf, fold*hidden)     folded outputs (lane-dense when fold*hidden == 128)
    """
    xs = xs_ref[...]
    xp = xp_ref[...]

    # Static, 8-aligned slices into the packed parameter slab.
    w1s = p_ref[0:w1s_rows, :]
    w1p = p_ref[w1p_off:w1p_off + w1p_rows, :]
    w2 = p_ref[w2_off:w2_off + w2_rows, :]
    b1 = p_ref[b1_off:b1_off + 1, :]
    b2 = p_ref[b2_off:b2_off + 1, :]

    # Layer 1: preference mean and the batch fold both ride the MXU
    # (block-diagonal w1, w1p pre-scaled by 1/n_obj).
    h = jnp.dot(xs, w1s, preferred_element_type=jnp.float32)
    h = h + jnp.dot(xp, w1p, preferred_element_type=jnp.float32)
    h = jnp.maximum(h + b1, 0.0)

    # Layer 2.
    h = jnp.dot(h, w2, preferred_element_type=jnp.float32) + b2
    out_ref[...] = jnp.maximum(h, 0.0)


def pack_params(params, n_obj, fold=4):
    """Pack (w1s, w1p, b1, w2, b2) into one lane-dense (rows, fold*hidden) slab.

    * Preference mean folded into the matmul:
        mean(pref) * w1p  ==  pref @ tile(w1p / n_obj, (n_obj, 1))
      (equal up to ~1 ulp of f32 rounding vs. the explicit mean).
    * Batch fold: weights become block-diagonal kron(eye(fold), W) so that the
      wrapper's free row-major reshapes (B,.)->(B/fold, fold*.) give bit-equal
      arithmetic with a 128-lane (fold=4, hidden=32) output slab.
    * Every segment starts at an 8-aligned row offset.
    """
    w1s, w1p, b1, w2, b2 = params
    eye = jnp.eye(fold, dtype=jnp.float32)

    w1p_exp = jnp.tile(w1p / n_obj, (n_obj, 1))        # (n_obj, hidden)
    w1s_bd = jnp.kron(eye, w1s)                        # (fold*state_dim, fold*hidden)
    w1p_bd = jnp.kron(eye, w1p_exp)                    # (fold*n_obj,     fold*hidden)
    w2_bd = jnp.kron(eye, w2)                          # (fold*hidden,    fold*hidden)
    b1_bd = jnp.tile(b1, (1, fold))                    # (1, fold*hidden)
    b2_bd = jnp.tile(b2, (1, fold))                    # (1, fold*hidden)

    segs, seg_off, row = [], {}, 0
    for name, mat in (("w1s", w1s_bd), ("w1p", w1p_bd), ("w2", w2_bd),
                      ("b1", b1_bd), ("b2", b2_bd)):
        seg_off[name] = (row, mat.shape[0])
        pad = _round_up(mat.shape[0], 8) - mat.shape[0]
        segs.append(jnp.pad(mat, ((0, pad), (0, 0))))
        row += mat.shape[0] + pad
    slab = jnp.concatenate(segs, axis=0)               # rows already 8-aligned
    return slab, seg_off


def feature_extractor(state, preference, param_slab, seg, hidden, *,
                      fold=4, block_b=8192):
    """state: (B, state_dim) f32, preference: (B, n_obj) f32 -> (B, hidden) f32."""
    B, state_dim = state.shape
    n_obj = preference.shape[1]
    Hf = fold * hidden
    assert B % fold == 0, "batch must be divisible by fold (pack with fold=1 otherwise)"
    assert param_slab.shape[1] == Hf

    Bf = B // fold
    xs = state.reshape(Bf, fold * state_dim)        # row-major reshape: free
    xp = preference.reshape(Bf, fold * n_obj)       # row-major reshape: free

    # Tile selection (in folded rows). Keep >= 2 grid steps once the batch is
    # large enough (B > 512) so "parallel" can shard across v7x's two
    # TensorCores; one step for small batches. tbf is a multiple of 8 unless it
    # equals the full folded batch. At tbf=2048 the double-buffered working set
    # is ~3.4 MiB -> well under even v5e's 16 MiB scoped-VMEM default, so no
    # vmem_limit_bytes override is needed.
    max_tbf = max(8, block_b // fold)
    if Bf <= 128:
        tbf = Bf
    else:
        tbf = min(max_tbf, _round_up(pl.cdiv(Bf, 2), 8))
    grid = (pl.cdiv(Bf, tbf),)
    # If Bf % tbf != 0, the last block's out-of-range rows read/compute garbage,
    # but their writeback is masked by Pallas -> never visible in the output.

    w1s_off, w1s_rows = seg["w1s"]
    w1p_off, w1p_rows = seg["w1p"]
    w2_off, w2_rows = seg["w2"]
    b1_off, _ = seg["b1"]
    b2_off, _ = seg["b2"]
    assert w1s_off == 0

    kernel = functools.partial(
        feature_extractor_kernel,
        w1s_rows=w1s_rows, w1p_off=w1p_off, w1p_rows=w1p_rows,
        w2_off=w2_off, w2_rows=w2_rows, b1_off=b1_off, b2_off=b2_off)

    cost = pl.CostEstimate(
        flops=2 * B * ((state_dim + n_obj) * hidden + hidden * hidden),
        transcendentals=0,
        bytes_accessed=4 * (B * (state_dim + n_obj + hidden) + int(param_slab.size)))

    out_f = pl.pallas_call(
        kernel,
        out_shape=jax.ShapeDtypeStruct((Bf, Hf), jnp.float32),
        grid=grid,
        in_specs=[
            pl.BlockSpec((tbf, fold * state_dim), lambda i: (i, 0)),   # tiled
            pl.BlockSpec((tbf, fold * n_obj), lambda i: (i, 0)),       # tiled
            pl.BlockSpec(param_slab.shape, lambda i: (0, 0)),          # resident weights
        ],
        out_specs=pl.BlockSpec((tbf, Hf), lambda i: (i, 0)),
        compiler_params=pltpu.CompilerParams(
            dimension_semantics=("parallel",)),
        cost_estimate=cost,
    )(xs, xp, param_slab)

    return out_f.reshape(B, hidden)                  # row-major reshape: free


def init_params(key, state_dim, hidden_dim):
    """Deterministic init mimicking torch.nn.Linear default (U[-1/sqrt(in), 1/sqrt(in)])."""
    input_dim = state_dim + 1  # state + mean-pooled preference feature
    k1, k2, k3, k4 = jax.random.split(key, 4)
    lim1 = 1.0 / jnp.sqrt(input_dim)
    lim2 = 1.0 / jnp.sqrt(hidden_dim)
    w1 = jax.random.uniform(k1, (input_dim, hidden_dim), jnp.float32, -lim1, lim1)
    b1 = jax.random.uniform(k2, (1, hidden_dim), jnp.float32, -lim1, lim1)
    w2 = jax.random.uniform(k3, (hidden_dim, hidden_dim), jnp.float32, -lim2, lim2)
    b2 = jax.random.uniform(k4, (1, hidden_dim), jnp.float32, -lim2, lim2)
    w1s = w1[:state_dim, :]          # (state_dim, hidden): state part of W1
    w1p = w1[state_dim:, :]          # (1, hidden): preference-feature part of W1
    return w1s, w1p, b1, w2, b2


def reference(state, preference, params):
    """Pure-JAX reference matching the PyTorch forward (explicit mean + concat).

    HIGHEST matmul precision so the f32-accurate kernel is compared against an
    f32-accurate baseline (TPU default f32 matmul precision is lower).
    """
    w1s, w1p, b1, w2, b2 = params
    pref_feat = preference.mean(axis=-1, keepdims=True)
    inputs = jnp.concatenate([state, pref_feat], axis=-1)
    w1 = jnp.concatenate([w1s, w1p], axis=0)
    h = jnp.maximum(
        jnp.dot(inputs, w1, precision=jax.lax.Precision.HIGHEST) + b1, 0.0)
    return jnp.maximum(
        jnp.dot(h, w2, precision=jax.lax.Precision.HIGHEST) + b2, 0.0)


if __name__ == "__main__":
    state_dim = 15
    n_obj = 3
    hidden_dim = 32

    key = jax.random.PRNGKey(0)
    k_state, k_pref, k_params = jax.random.split(key, 3)
    params = init_params(k_params, state_dim, hidden_dim)

    def check(batch):
        fold = 4 if batch % 4 == 0 else 1            # fold=1 fallback path
        slab, seg = pack_params(params, n_obj, fold=fold)   # one-time packing
        ks, kp = jax.random.split(jax.random.fold_in(k_state, batch))
        state = jax.random.normal(ks, (batch, state_dim), jnp.float32)
        preference = jax.random.uniform(kp, (batch, n_obj), jnp.float32)

        run = jax.jit(lambda s, p, w: feature_extractor(
            s, p, w, seg, hidden_dim, fold=fold))
        out = jax.block_until_ready(run(state, preference, slab))

        ref = reference(state, preference, params)
        assert out.shape == (batch, hidden_dim)
        assert jnp.allclose(out, ref, atol=1e-5, rtol=1e-5), \
            f"mismatch vs JAX reference at batch={batch}"

    check(8)       # small smoke test (single grid step)
    check(1024)    # multi-step grid, "parallel" batch axis (2 steps)

    # TODO(synk): 'max' / 'rnn' / 'transformer' preference-handling branches
    # (incl. the GRU) and the 1/3/4-layer MLP configs are outside this fixed
    # config and not implemented here.

    print("KERNEL_OK")
</pallas_src>

<mosaic_0001>
module attributes {stable_mosaic.version = 11 : i64} {
  func.func @feature_extractor_kernel(%arg0: i32, %arg1: memref<2x60xf32, #tpu.memory_space<vmem>>, %arg2: memref<2x12xf32, #tpu.memory_space<vmem>>, %arg3: memref<224x128xf32, #tpu.memory_space<vmem>>, %arg4: memref<2x128xf32, #tpu.memory_space<vmem>>) attributes {dimension_semantics = [#tpu.dimension_semantics<parallel>], iteration_bounds = array<i64: 1>, scalar_prefetch = 0 : i64, scratch_operands = 0 : i64, tpu.core_type = #tpu.core_type<tc>, window_params = [{transform_indices = @transform_0, window_bounds = array<i64: 2, 60>}, {transform_indices = @transform_1, window_bounds = array<i64: 2, 12>}, {pipeline_mode = #tpu.pipeline_mode<synchronous>, transform_indices = @transform_2, window_bounds = array<i64: 224, 128>}, {transform_indices = @transform_3, window_bounds = array<i64: 2, 128>}]} {
    %c0 = arith.constant 0 : index
    %c0_0 = arith.constant 0 : index
    %0 = vector.load %arg1[%c0, %c0_0] : memref<2x60xf32, #tpu.memory_space<vmem>>, vector<2x60xf32>
    %c0_1 = arith.constant 0 : index
    %c0_2 = arith.constant 0 : index
    %1 = vector.load %arg2[%c0_1, %c0_2] : memref<2x12xf32, #tpu.memory_space<vmem>>, vector<2x12xf32>
    %c0_3 = arith.constant 0 : index
    %c0_4 = arith.constant 0 : index
    %2 = vector.load %arg3[%c0_3, %c0_4] : memref<224x128xf32, #tpu.memory_space<vmem>>, vector<60x128xf32>
    %c64 = arith.constant 64 : index
    %c0_5 = arith.constant 0 : index
    %3 = vector.load %arg3[%c64, %c0_5] : memref<224x128xf32, #tpu.memory_space<vmem>>, vector<12x128xf32>
    %c80 = arith.constant 80 : index
    %c0_6 = arith.constant 0 : index
    %4 = vector.load %arg3[%c80, %c0_6] : memref<224x128xf32, #tpu.memory_space<vmem>>, vector<128x128xf32>
    %c208 = arith.constant 208 : index
    %c0_7 = arith.constant 0 : index
    %5 = vector.load %arg3[%c208, %c0_7] : memref<224x128xf32, #tpu.memory_space<vmem>>, vector<1x128xf32>
    %c216 = arith.constant 216 : index
    %c0_8 = arith.constant 0 : index
    %6 = vector.load %arg3[%c216, %c0_8] : memref<224x128xf32, #tpu.memory_space<vmem>>, vector<1x128xf32>
    %cst = arith.constant dense<0.000000e+00> : vector<2x128xf32>
    %7 = tpu.matmul %0, %2, %cst {dimension_numbers = #tpu.dot_dimension_numbers<[1], [0], [0], [1], [0, 0, 1, 1], [], []>} : vector<2x60xf32>, vector<60x128xf32>, vector<2x128xf32> -> vector<2x128xf32>
    %cst_9 = arith.constant dense<0.000000e+00> : vector<2x128xf32>
    %8 = tpu.matmul %1, %3, %cst_9 {dimension_numbers = #tpu.dot_dimension_numbers<[1], [0], [0], [1], [0, 0, 1, 1], [], []>} : vector<2x12xf32>, vector<12x128xf32>, vector<2x128xf32> -> vector<2x128xf32>
    %9 = arith.addf %7, %8 : vector<2x128xf32>
    %10 = vector.broadcast %5 : vector<1x128xf32> to vector<2x128xf32>
    %11 = arith.addf %9, %10 : vector<2x128xf32>
    %cst_10 = arith.constant 0.000000e+00 : f32
    %12 = vector.broadcast %cst_10 : f32 to vector<2x128xf32>
    %13 = arith.maximumf %11, %12 : vector<2x128xf32>
    %cst_11 = arith.constant dense<0.000000e+00> : vector<2x128xf32>
    %14 = tpu.matmul %13, %4, %cst_11 {dimension_numbers = #tpu.dot_dimension_numbers<[1], [0], [0], [1], [0, 0, 1, 1], [], []>} : vector<2x128xf32>, vector<128x128xf32>, vector<2x128xf32> -> vector<2x128xf32>
    %15 = vector.broadcast %6 : vector<1x128xf32> to vector<2x128xf32>
    %16 = arith.addf %14, %15 : vector<2x128xf32>
    %cst_12 = arith.constant 0.000000e+00 : f32
    %17 = vector.broadcast %cst_12 : f32 to vector<2x128xf32>
    %18 = arith.maximumf %16, %17 : vector<2x128xf32>
    %c0_13 = arith.constant 0 : index
    %c0_14 = arith.constant 0 : index
    %19 = vector.load %arg4[%c0_13, %c0_14] : memref<2x128xf32, #tpu.memory_space<vmem>>, vector<2x128xf32>
    tpu.vector_store %arg4[%c0_13, %c0_14], %18 {strides = array<i32>} : memref<2x128xf32, #tpu.memory_space<vmem>>, vector<2x128xf32>,
    return
  }
  func.func @transform_0(%arg0: i32) -> (i32, i32) {
    %c0_i32 = arith.constant 0 : i32
    %c0_i32_0 = arith.constant 0 : i32
    return %arg0, %c0_i32 : i32, i32
  }
  func.func @transform_1(%arg0: i32) -> (i32, i32) {
    %c0_i32 = arith.constant 0 : i32
    %c0_i32_0 = arith.constant 0 : i32
    return %arg0, %c0_i32 : i32, i32
  }
  func.func @transform_2(%arg0: i32) -> (i32, i32) {
    %c0_i32 = arith.constant 0 : i32
    %c0_i32_0 = arith.constant 0 : i32
    %c0_i32_1 = arith.constant 0 : i32
    return %c0_i32, %c0_i32_0 : i32, i32
  }
  func.func @transform_3(%arg0: i32) -> (i32, i32) {
    %c0_i32 = arith.constant 0 : i32
    %c0_i32_0 = arith.constant 0 : i32
    return %arg0, %c0_i32 : i32, i32
  }
}

</mosaic_0001>

<llo_original>
// kernel: _lambda_.1
$region0: #{_lambda_.1}
  #allocation0 [shape = 'u32[]', space=smem, size = 0x4, offset = 0x4, fixed_abs, tag = 'smem constant byte address 0x4 - core index']
  #allocation1 [shape = 'u32[144,128]{1,0:T(1,128)}', space=vmem, size = 0x12000, scoped, tag = 'internal scratch']
  %s0 = inlined_call_operand.vmem [shape: f32[2,60], index: 0, kind: input, shape index: {}]
  %s1 = inlined_call_operand.vmem [shape: f32[2,12], index: 1, kind: input, shape index: {}]
  %s2 = inlined_call_operand.hbm [shape: f32[224,128], index: 2, kind: input, shape index: {}]
  %s3 = inlined_call_operand.vmem [shape: f32[2,128], index: 3, kind: output, shape index: {}]
  %s4 = sld [smem:[#allocation0]]
  $region26: #{_lambda_.1} parent=0
    _
  %s6 = ssub.s32 1, %s4
  %s7 = scalar_select 0, %s6, %s4
  $region1: #{_lambda_.1} parent=0
    #allocation2 [shape = 'u8[114688]{0}', space=vmem, size = 0x1c000, scoped, tag = 'input window, operand 2, single buffered']
    #allocation3 [shape = 's32[1]{0}', space=sflag, size = 0x4, scoped, tag = 'scoped memory for _lambda_.1']
    %8 = vsyncpa [#allocation3], 0
    // Predicated region
    $region2: #{_lambda_.1} parent=1 // pred_check
      _
    $region3: #{_lambda_.1} parent=1 // pred_check_branch
      %10 = sbr.rel (0) target = $region5
    $region4: #{_lambda_.1} parent=1 // pred_region
      _
    $region5: #{_lambda_.1} parent=1 // pred_fallthru
      _
    // Predicated region
    $region6: #{_lambda_.1} parent=1 // pred_check
      _
    $region7: #{_lambda_.1} parent=1 // pred_check_branch
      %12 = sbr.rel (0) target = $region9
    $region8: #{_lambda_.1} parent=1 // pred_region
      _
    $region9: #{_lambda_.1} parent=1 // pred_fallthru
      _
    // Predicated region
    $region10: #{_lambda_.1} parent=1 // pred_check
      _
    $region11: #{_lambda_.1} parent=1 // pred_check_branch
      %14 = sbr.rel (0) target = $region13
    $region12: #{_lambda_.1} parent=1 // pred_region
      %s16 = ssub.s32 3584, 3584
      %17 = vsyncadd [#allocation3], %s16
      %s18 = sshll.u32 [#allocation2], 4
      %s19 = int_to_ptr.vmem [resolvable:$true] %s18
      %24 = dma.hbm_to_vmem [thread:$0]  %s2, 3584, %s19, [#allocation3], 128, 128, 8
    $region13: #{_lambda_.1} parent=1 // pred_fallthru
      _
    // Predicated region
    $region14: #{_lambda_.1} parent=1 // pred_check
      _
    $region15: #{_lambda_.1} parent=1 // pred_check_branch
      %26 = sbr.rel (0) target = $region17
    $region16: #{_lambda_.1} parent=1 // pred_region
      %27 = dma.done [#allocation3], 3584
    $region17: #{_lambda_.1} parent=1 // pred_fallthru
      _
    %v28 = vld [vmem:[%s0] sm:$0x3]
    %v29 = vld [vmem:[%s1] sm:$0x3]
    %v30 = vld [vmem:[#allocation2] sm:$0xff]
    %v31 = vld [vmem:[#allocation2 + $0x8] sm:$0xff]
    %v32 = vld [vmem:[#allocation2 + $0x10] sm:$0xff]
    %v33 = vld [vmem:[#allocation2 + $0x18] sm:$0xff]
    %v34 = vld [vmem:[#allocation2 + $0x20] sm:$0xff]
    %v35 = vld [vmem:[#allocation2 + $0x28] sm:$0xff]
    %v36 = vld [vmem:[#allocation2 + $0x30] sm:$0xff]
    %v37 = vld [vmem:[#allocation2 + $0x38] sm:$0xf]
    %v38 = vld [vmem:[#allocation2 + $0x40] sm:$0xff]
    %v39 = vld [vmem:[#allocation2 + $0x48] sm:$0xf]
    %v40 = vld [vmem:[#allocation2 + $0x50] sm:$0xff]
    %v41 = vld [vmem:[#allocation2 + $0x58] sm:$0xff]
    %v42 = vld [vmem:[#allocation2 + $0x60] sm:$0xff]
    %v43 = vld [vmem:[#allocation2 + $0x68] sm:$0xff]
    %v44 = vld [vmem:[#allocation2 + $0x70] sm:$0xff]
    %v45 = vld [vmem:[#allocation2 + $0x78] sm:$0xff]
    %v46 = vld [vmem:[#allocation2 + $0x80] sm:$0xff]
    %v47 = vld [vmem:[#allocation2 + $0x88] sm:$0xff]
    %v48 = vld [vmem:[#allocation2 + $0x90] sm:$0xff]
    %v49 = vld [vmem:[#allocation2 + $0x98] sm:$0xff]
    %v50 = vld [vmem:[#allocation2 + $0xa0] sm:$0xff]
    %v51 = vld [vmem:[#allocation2 + $0xa8] sm:$0xff]
    %v52 = vld [vmem:[#allocation2 + $0xb0] sm:$0xff]
    %v53 = vld [vmem:[#allocation2 + $0xb8] sm:$0xff]
    %v54 = vld [vmem:[#allocation2 + $0xc0] sm:$0xff]
    %v55 = vld [vmem:[#allocation2 + $0xc8] sm:$0xff]
    %v56 = vld [vmem:[#allocation2 + $0xd0] sm:$0x1]
    %v57 = vld [vmem:[#allocation2 + $0xd8] sm:$0x1]
    %vm58 = vcmask 97280
    %v60 = vsel %vm58, %v29, 0
    %vm62 = vcmask 1043456
    %v64 = vsel %vm62, %v39, 0
    %66 = vmatprep.subr.mxu0 0.0
    %67 = vmatpush1.msra.mxu0 %v38
    %68 = vmatprep.subr.mxu0 0.0
    %69 = vmatpush1.msra.mxu0 %v64
    %70 = vmatprep.subr.mxu0 0.0
    %71 = vmatpush1.msra.mxu0 0.0
    %72 = vmatprep.subr.mxu0 0.0
    %73 = vmatpush1.msra.mxu0 0.0
    %74 = vmatprep.subr.mxu0 0.0
    %75 = vmatpush1.msra.mxu0 0.0
    %76 = vmatprep.subr.mxu0 0.0
    %77 = vmatpush1.msra.mxu0 0.0
    %78 = vmatprep.subr.mxu0 0.0
    %79 = vmatpush1.msra.mxu0 0.0
    %80 = vmatprep.subr.mxu0 0.0
    %81 = vmatpush1.msra.mxu0 0.0
    %82 = vmatprep.subr.mxu0 0.0
    %83 = vmatpush1.msra.mxu0 0.0
    %84 = vmatprep.subr.mxu0 0.0
    %85 = vmatpush1.msra.mxu0 0.0
    %86 = vmatprep.subr.mxu0 0.0
    %87 = vmatpush1.msra.mxu0 0.0
    %88 = vmatprep.subr.mxu0 0.0
    %89 = vmatpush1.msra.mxu0 0.0
    %90 = vmatprep.subr.mxu0 0.0
    %91 = vmatpush1.msra.mxu0 0.0
    %92 = vmatprep.subr.mxu0 0.0
    %93 = vmatpush1.msra.mxu0 0.0
    %94 = vmatprep.subr.mxu0 0.0
    %95 = vmatpush1.msra.mxu0 0.0
    %96 = vmatprep.subr.mxu0 0.0
    %97 = vmatpush1.msra.mxu0 0.0
    %98 = vmatprep.subr.mxu0 0.0
    %99 = vmatpush1.msra.mxu0 0.0
    %100 = vmatprep.subr.mxu0 0.0
    %101 = vmatpush1.msra.mxu0 0.0
    %102 = vmatprep.subr.mxu0 0.0
    %103 = vmatpush1.msra.mxu0 0.0
    %104 = vmatprep.subr.mxu0 0.0
    %105 = vmatpush1.msra.mxu0 0.0
    %106 = vmatprep.subr.mxu0 0.0
    %107 = vmatpush1.msra.mxu0 0.0
    %108 = vmatprep.subr.mxu0 0.0
    %109 = vmatpush1.msra.mxu0 0.0
    %110 = vmatprep.subr.mxu0 0.0
    %111 = vmatpush1.msra.mxu0 0.0
    %112 = vmatprep.subr.mxu0 0.0
    %113 = vmatpush1.msra.mxu0 0.0
    %114 = vmatprep.subr.mxu0 0.0
    %115 = vmatpush1.msra.mxu0 0.0
    %116 = vmatprep.subr.mxu0 0.0
    %117 = vmatpush1.msra.mxu0 0.0
    %118 = vmatprep.subr.mxu0 0.0
    %119 = vmatpush1.msra.mxu0 0.0
    %120 = vmatprep.subr.mxu0 0.0
    %121 = vmatpush1.msra.mxu0 0.0
    %122 = vmatprep.subr.mxu0 0.0
    %123 = vmatpush1.msra.mxu0 0.0
    %124 = vmatprep.subr.mxu0 0.0
    %125 = vmatpush1.msra.mxu0 0.0
    %126 = vmatprep.subr.mxu0 0.0
    %127 = vmatpush1.msra.mxu0 0.0
    %128 = vmatprep.subr.mxu0 0.0
    %129 = vmatpush1.msra.mxu0 0.0
    %130 = vmatprep.mubr.f32.mxu0 0.0
    %131 = vmatmul.mubr.f32.gmra.mrb[0].mxu0 %v60
    %v132 = vpop.f32.mrb[0].mxu0
    %v133 = vadd.f32 0.0, %v132
    %v134 = vpop.f32.mrb[0].mxu0
    %135 = vdwg.mxu0
    %vm136 = vcmask 490496
    %v138 = vsel %vm136, %v28, 0
    %v141 = vsel %vm62, %v37, 0
    %143 = vmatprep.subr.mxu0 0.0
    %144 = vmatpush1.msra.mxu0 %v30
    %145 = vmatprep.subr.mxu0 0.0
    %146 = vmatpush1.msra.mxu0 %v31
    %147 = vmatprep.subr.mxu0 0.0
    %148 = vmatpush1.msra.mxu0 %v32
    %149 = vmatprep.subr.mxu0 0.0
    %150 = vmatpush1.msra.mxu0 %v33
    %151 = vmatprep.subr.mxu0 0.0
    %152 = vmatpush1.msra.mxu0 %v34
    %153 = vmatprep.subr.mxu0 0.0
    %154 = vmatpush1.msra.mxu0 %v35
    %155 = vmatprep.subr.mxu0 0.0
    %156 = vmatpush1.msra.mxu0 %v36
    %157 = vmatprep.subr.mxu0 0.0
    %158 = vmatpush1.msra.mxu0 %v141
    %159 = vmatprep.subr.mxu0 0.0
    %160 = vmatpush1.msra.mxu0 0.0
    %161 = vmatprep.subr.mxu0 0.0
    %162 = vmatpush1.msra.mxu0 0.0
    %163 = vmatprep.subr.mxu0 0.0
    %164 = vmatpush1.msra.mxu0 0.0
    %165 = vmatprep.subr.mxu0 0.0
    %166 = vmatpush1.msra.mxu0 0.0
    %167 = vmatprep.subr.mxu0 0.0
    %168 = vmatpush1.msra.mxu0 0.0
    %169 = vmatprep.subr.mxu0 0.0
    %170 = vmatpush1.msra.mxu0 0.0
    %171 = vmatprep.subr.mxu0 0.0
    %172 = vmatpush1.msra.mxu0 0.0
    %173 = vmatprep.subr.mxu0 0.0
    %174 = vmatpush1.msra.mxu0 0.0
    %175 = vmatprep.subr.mxu0 0.0
    %176 = vmatpush1.msra.mxu0 0.0
    %177 = vmatprep.subr.mxu0 0.0
    %178 = vmatpush1.msra.mxu0 0.0
    %179 = vmatprep.subr.mxu0 0.0
    %180 = vmatpush1.msra.mxu0 0.0
    %181 = vmatprep.subr.mxu0 0.0
    %182 = vmatpush1.msra.mxu0 0.0
    %183 = vmatprep.subr.mxu0 0.0
    %184 = vmatpush1.msra.mxu0 0.0
    %185 = vmatprep.subr.mxu0 0.0
    %186 = vmatpush1.msra.mxu0 0.0
    %187 = vmatprep.subr.mxu0 0.0
    %188 = vmatpush1.msra.mxu0 0.0
    %189 = vmatprep.subr.mxu0 0.0
    %190 = vmatpush1.msra.mxu0 0.0
    %191 = vmatprep.subr.mxu0 0.0
    %192 = vmatpush1.msra.mxu0 0.0
    %193 = vmatprep.subr.mxu0 0.0
    %194 = vmatpush1.msra.mxu0 0.0
    %195 = vmatprep.subr.mxu0 0.0
    %196 = vmatpush1.msra.mxu0 0.0
    %197 = vmatprep.subr.mxu0 0.0
    %198 = vmatpush1.msra.mxu0 0.0
    %199 = vmatprep.subr.mxu0 0.0
    %200 = vmatpush1.msra.mxu0 0.0
    %201 = vmatprep.subr.mxu0 0.0
    %202 = vmatpush1.msra.mxu0 0.0
    %203 = vmatprep.subr.mxu0 0.0
    %204 = vmatpush1.msra.mxu0 0.0
    %205 = vmatprep.subr.mxu0 0.0
    %206 = vmatpush1.msra.mxu0 0.0
    %207 = vmatprep.mubr.f32.mxu0 0.0
    %208 = vmatmul.mubr.f32.gmra.mrb[0].mxu0 %v138
    %v209 = vpop.f32.mrb[0].mxu0
    %v210 = vadd.f32 %v133, %v209
    %v211 = vpop.f32.mrb[0].mxu0
    %212 = vdwg.mxu0
    %v213 = vlaneseq
    %v214 = vshrl.u32 %v213, 7
    %v215 = vsub.s32 0, %v214
    %v216 = vrot.slane %v56, %v215
    %v217 = vadd.f32 %v210, %v216
    %v218 = vmax.f32 %v217, 0.0
    %v219 = vlaneseq
    %v220 = vshrl.u32 %v219, 7
    %v221 = vsub.s32 0, %v220
    %v222 = vrot.slane %v57, %v221
    %223 = vmatprep.subr.mxu0 0.0
    %224 = vmatpush1.msra.mxu0 %v40
    %225 = vmatprep.subr.mxu0 0.0
    %226 = vmatpush1.msra.mxu0 %v41
    %227 = vmatprep.subr.mxu0 0.0
    %228 = vmatpush1.msra.mxu0 %v42
    %229 = vmatprep.subr.mxu0 0.0
    %230 = vmatpush1.msra.mxu0 %v43
    %231 = vmatprep.subr.mxu0 0.0
    %232 = vmatpush1.msra.mxu0 %v44
    %233 = vmatprep.subr.mxu0 0.0
    %234 = vmatpush1.msra.mxu0 %v45
    %235 = vmatprep.subr.mxu0 0.0
    %236 = vmatpush1.msra.mxu0 %v46
    %237 = vmatprep.subr.mxu0 0.0
    %238 = vmatpush1.msra.mxu0 %v47
    %239 = vmatprep.subr.mxu0 0.0
    %240 = vmatpush1.msra.mxu0 %v48
    %241 = vmatprep.subr.mxu0 0.0
    %242 = vmatpush1.msra.mxu0 %v49
    %243 = vmatprep.subr.mxu0 0.0
    %244 = vmatpush1.msra.mxu0 %v50
    %245 = vmatprep.subr.mxu0 0.0
    %246 = vmatpush1.msra.mxu0 %v51
    %247 = vmatprep.subr.mxu0 0.0
    %248 = vmatpush1.msra.mxu0 %v52
    %249 = vmatprep.subr.mxu0 0.0
    %250 = vmatpush1.msra.mxu0 %v53
    %251 = vmatprep.subr.mxu0 0.0
    %252 = vmatpush1.msra.mxu0 %v54
    %253 = vmatprep.subr.mxu0 0.0
    %254 = vmatpush1.msra.mxu0 %v55
    %255 = vmatprep.subr.mxu0 0.0
    %256 = vmatpush1.msra.mxu0 0.0
    %257 = vmatprep.subr.mxu0 0.0
    %258 = vmatpush1.msra.mxu0 0.0
    %259 = vmatprep.subr.mxu0 0.0
    %260 = vmatpush1.msra.mxu0 0.0
    %261 = vmatprep.subr.mxu0 0.0
    %262 = vmatpush1.msra.mxu0 0.0
    %263 = vmatprep.subr.mxu0 0.0
    %264 = vmatpush1.msra.mxu0 0.0
    %265 = vmatprep.subr.mxu0 0.0
    %266 = vmatpush1.msra.mxu0 0.0
    %267 = vmatprep.subr.mxu0 0.0
    %268 = vmatpush1.msra.mxu0 0.0
    %269 = vmatprep.subr.mxu0 0.0
    %270 = vmatpush1.msra.mxu0 0.0
    %271 = vmatprep.subr.mxu0 0.0
    %272 = vmatpush1.msra.mxu0 0.0
    %273 = vmatprep.subr.mxu0 0.0
    %274 = vmatpush1.msra.mxu0 0.0
    %275 = vmatprep.subr.mxu0 0.0
    %276 = vmatpush1.msra.mxu0 0.0
    %277 = vmatprep.subr.mxu0 0.0
    %278 = vmatpush1.msra.mxu0 0.0
    %279 = vmatprep.subr.mxu0 0.0
    %280 = vmatpush1.msra.mxu0 0.0
    %281 = vmatprep.subr.mxu0 0.0
    %282 = vmatpush1.msra.mxu0 0.0
    %283 = vmatprep.subr.mxu0 0.0
    %284 = vmatpush1.msra.mxu0 0.0
    %285 = vmatprep.subr.mxu0 0.0
    %286 = vmatpush1.msra.mxu0 0.0
    %287 = vmatprep.mubr.f32.mxu0 0.0
    %288 = vmatmul.mubr.f32.gmra.mrb[0].mxu0 %v218
    %v289 = vpop.f32.mrb[0].mxu0
    %v290 = vadd.f32 %v222, %v289
    %v291 = vpop.f32.mrb[0].mxu0
    %292 = vdwg.mxu0
    %v293 = vmax.f32 %v290, 0.0
    %294 = vst [vmem:[%s3] sm:$0x3] %v293
    // Predicated region
    $region18: #{_lambda_.1} parent=1 // pred_check
      _
    $region19: #{_lambda_.1} parent=1 // pred_check_branch
      %296 = sbr.rel (0) target = $region21
    $region20: #{_lambda_.1} parent=1 // pred_region
      _
    $region21: #{_lambda_.1} parent=1 // pred_fallthru
      _
    // Predicated region
    $region22: #{_lambda_.1} parent=1 // pred_check
      _
    $region23: #{_lambda_.1} parent=1 // pred_check_branch
      %298 = sbr.rel (0) target = $region25
    $region24: #{_lambda_.1} parent=1 // pred_region
      _
    $region25: #{_lambda_.1} parent=1 // pred_fallthru
      _
    %299 = vsyncpa [#allocation3], 1

</llo_original>
